<compile_context>
chip_gen: v5e
topology: v5e:2x2
jax: 0.10.0
libtpu: 0.0.40
codegen_flags: <defaults>
</compile_context>

<pallas_src>
import functools

import jax
import jax.numpy as jnp
from jax.experimental import pallas as pl
from jax.experimental.pallas import tpu as pltpu

LANES = 128
SUBLANES = 8


def _wmae_kernel(pred_ref, true_ref, sum_ref, cnt_ref, *,
                 weight, ignore_pixel, block_rows, blocks_per_slice,
                 num_blocks, rows, last_row_lanes, needs_edge_mask):
    c = pl.program_id(0)          # slice axis ("parallel", v7x megacore)
    i = pl.program_id(1)          # reduction axis (last, "arbitrary")

    @pl.when(i == 0)
    def _():
        sum_ref[...] = jnp.zeros_like(sum_ref)
        cnt_ref[...] = jnp.zeros_like(cnt_ref)

    def accumulate(mask_tail):
        p = pred_ref[...]
        t = true_ref[...]
        in_dt = t.dtype
        # Element-wise math stays in the input dtype (bf16 VPU on v6e/v7x).
        valid = t != jnp.asarray(ignore_pixel, in_dt)
        term = jnp.abs(p - t)
        if weight != 1:
            w = jnp.where(t > jnp.asarray(0, in_dt),
                          jnp.asarray(weight, in_dt),
                          jnp.asarray(1 - weight, in_dt))
            term = w * term
        term = term.astype(jnp.float32)

        if mask_tail:
            # Only the edge/phantom blocks ever execute this path.  Any garbage
            # (even NaN) in the partial-block padding is discarded by the
            # select below, so the pad contents never matter.
            blk = c * blocks_per_slice + i
            row0 = blk * block_rows
            grow = row0 + jax.lax.broadcasted_iota(
                jnp.int32, (block_rows, LANES), 0)
            if last_row_lanes == LANES:
                in_range = grow < rows
            else:
                lane = jax.lax.broadcasted_iota(
                    jnp.int32, (block_rows, LANES), 1)
                in_range = (grow < rows - 1) | (
                    (grow == rows - 1) & (lane < last_row_lanes))
            valid = jnp.logical_and(valid, in_range)

        # Single select for the numerator, cast for the denominator; fold
        # (block_rows,128) -> (1,8,128) with pure VPU adds (f32 tiles intact).
        term = jnp.where(valid, term, 0.0)
        ones = valid.astype(jnp.float32)
        sum_ref[...] += term.reshape(-1, SUBLANES, LANES).sum(axis=0, keepdims=True)
        cnt_ref[...] += ones.reshape(-1, SUBLANES, LANES).sum(axis=0, keepdims=True)

    if needs_edge_mask:
        blk = c * blocks_per_slice + i
        pl.when(blk >= num_blocks - 1)(lambda: accumulate(True))
        pl.when(blk < num_blocks - 1)(lambda: accumulate(False))
    else:
        accumulate(False)


def _input_spec(block_rows, index_map, n_buf):
    """Input BlockSpec with deeper pipelining when available; graceful fallback."""
    if n_buf != 2:
        try:
            return pl.BlockSpec((block_rows, LANES), index_map,
                                pipeline_mode=pl.Buffered(buffer_count=n_buf))
        except Exception:  # older JAX without pipeline_mode / Buffered
            pass
    return pl.BlockSpec((block_rows, LANES), index_map)


def wmae_loss(y_pred, y_true, weight=1, ignore_pixel=-1,
              block_rows=None, num_slices=2):
    """JAX/Pallas equivalent of WMAELoss.forward (returns f32 scalar)."""
    n = int(y_pred.size)
    if n == 0:
        # torch.mean over an empty selection is NaN -> replaced with 0.0
        return jnp.float32(0.0)

    pred_flat = jnp.ravel(y_pred)          # native dtype; kernel promotes late
    true_flat = jnp.ravel(y_true)

    rows = -(-n // LANES)                  # ceil(n / 128)
    last_row_lanes = n - (rows - 1) * LANES   # in 1..128
    lane_pad = rows * LANES - n
    if lane_pad:
        # TODO(synk): the sub-128 lane tail still costs one pad copy; values are
        # irrelevant (masked by flat index).  Real NCHW/NHWC tensors have
        # n % 128 == 0 and take the zero-copy path above.
        pred_flat = jnp.pad(pred_flat, (0, lane_pad))
        true_flat = jnp.pad(true_flat, (0, lane_pad))
    pred2d = pred_flat.reshape(rows, LANES)
    true2d = true_flat.reshape(rows, LANES)

    isz = pred2d.dtype.itemsize + true2d.dtype.itemsize
    if block_rows is None:
        # ~2-4 MiB per input per buffer; fits all of v5e/v6e/v7x with depth 3.
        block_rows = min(8192, (8 << 20) // (LANES * isz))
    block_rows = max(32, (block_rows // 32) * 32)      # packed-sublane safe (f32/bf16/i8)
    block_rows = min(block_rows, -(-rows // 32) * 32)  # don't oversize tiny inputs

    num_blocks = -(-rows // block_rows)
    num_slices = max(1, min(num_slices, num_blocks))
    blocks_per_slice = -(-num_blocks // num_slices)
    total_blocks = num_slices * blocks_per_slice
    needs_edge_mask = (total_blocks > num_blocks
                       or rows % block_rows != 0
                       or last_row_lanes != LANES)

    if total_blocks == num_blocks:
        in_map = lambda c, i: (c * blocks_per_slice + i, 0)
    else:
        # Clamp phantom steps onto the last real block; the kernel masks their
        # contribution to exactly zero (at most num_slices-1 duplicated blocks).
        in_map = lambda c, i: (jnp.minimum(c * blocks_per_slice + i,
                                           num_blocks - 1), 0)
    out_map = lambda c, i: (c, 0, 0)

    n_buf = 3 if blocks_per_slice >= 3 else 2
    block_bytes = block_rows * LANES * isz
    vmem_limit = int(min(max(n_buf * block_bytes + (8 << 20), 32 << 20), 48 << 20))

    kernel = functools.partial(
        _wmae_kernel, weight=weight, ignore_pixel=ignore_pixel,
        block_rows=block_rows, blocks_per_slice=blocks_per_slice,
        num_blocks=num_blocks, rows=rows, last_row_lanes=last_row_lanes,
        needs_edge_mask=needs_edge_mask)

    cost = pl.CostEstimate(
        flops=10 * n, transcendentals=0,
        bytes_accessed=n * isz + 2 * num_slices * SUBLANES * LANES * 4)

    sum_part, cnt_part = pl.pallas_call(
        kernel,
        out_shape=(
            jax.ShapeDtypeStruct((num_slices, SUBLANES, LANES), jnp.float32),
            jax.ShapeDtypeStruct((num_slices, SUBLANES, LANES), jnp.float32),
        ),
        grid_spec=pltpu.PrefetchScalarGridSpec(
            num_scalar_prefetch=0,
            grid=(num_slices, blocks_per_slice),
            in_specs=[
                _input_spec(block_rows, in_map, n_buf),
                _input_spec(block_rows, in_map, n_buf),
            ],
            out_specs=[
                pl.BlockSpec((1, SUBLANES, LANES), out_map),
                pl.BlockSpec((1, SUBLANES, LANES), out_map),
            ],
        ),
        compiler_params=pltpu.CompilerParams(
            dimension_semantics=("parallel", "arbitrary"),
            vmem_limit_bytes=vmem_limit,
        ),
        cost_estimate=cost,
    )(pred2d, true2d)

    wsum = jnp.sum(sum_part)
    cnt = jnp.sum(cnt_part)
    result = jnp.where(cnt > 0, wsum / jnp.maximum(cnt, 1.0), jnp.float32(0.0))
    # Mirror the module's `if torch.isnan(result): result = 0` (NaN inputs etc.)
    return jnp.where(jnp.isnan(result), jnp.float32(0.0), result)


def _wmae_ref(y_pred, y_true, weight=1, ignore_pixel=-1):
    """Plain-JAX reference mirroring the PyTorch forward (same dtype semantics)."""
    p = jnp.ravel(y_pred)
    t = jnp.ravel(y_true)
    valid = t != jnp.asarray(ignore_pixel, t.dtype)
    d = jnp.abs(p - t)
    if weight != 1:
        w = jnp.where(t > jnp.asarray(0, t.dtype),
                      jnp.asarray(weight, t.dtype),
                      jnp.asarray(1 - weight, t.dtype))
        d = w * d
    d = d.astype(jnp.float32)
    num = jnp.sum(jnp.where(valid, d, 0.0))
    den = jnp.sum(valid.astype(jnp.float32))
    res = jnp.where(den > 0, num / jnp.maximum(den, 1.0), jnp.float32(0.0))
    return jnp.where(jnp.isnan(res), jnp.float32(0.0), res)


def _make_inputs(key, shape, dtype, ignore_frac=0.2, ignore_pixel=-1.0):
    k1, k2, k3 = jax.random.split(key, 3)
    p = jax.random.normal(k1, shape, dtype=jnp.float32).astype(dtype)
    t = jax.random.normal(k2, shape, dtype=jnp.float32).astype(dtype)
    m = jax.random.uniform(k3, shape) < ignore_frac
    t = jnp.where(m, jnp.asarray(ignore_pixel, dtype), t)
    return p, t


if __name__ == "__main__":
    key = jax.random.PRNGKey(0)
    k1, k2, k3, k4, k5 = jax.random.split(key, 5)

    # 1) NCHW f32, default-weight path, zero-copy lane-dense path + edge mask.
    p, t = _make_inputs(k1, (2, 4, 16, 16), jnp.float32)
    out = wmae_loss(p, t, weight=1, ignore_pixel=-1)
    jax.block_until_ready(out)
    ref = _wmae_ref(p, t, weight=1, ignore_pixel=-1)
    assert jnp.allclose(out, ref, atol=1e-5, rtol=1e-5), (out, ref)

    # 2) Same inputs, weighted path.
    out_w = wmae_loss(p, t, weight=0.7, ignore_pixel=-1)
    jax.block_until_ready(out_w)
    ref_w = _wmae_ref(p, t, weight=0.7, ignore_pixel=-1)
    assert jnp.allclose(out_w, ref_w, atol=1e-5, rtol=1e-5), (out_w, ref_w)

    # 3) Ragged element count (n % 128 != 0) -> lane-tail masking path.
    p3, t3 = _make_inputs(k2, (3, 5, 7), jnp.float32, ignore_frac=0.3)
    out3 = wmae_loss(p3, t3, weight=0.3, ignore_pixel=-1)
    jax.block_until_ready(out3)
    ref3 = _wmae_ref(p3, t3, weight=0.3, ignore_pixel=-1)
    assert jnp.allclose(out3, ref3, atol=1e-5, rtol=1e-5), (out3, ref3)

    # 4) bf16, evenly-split 2-slice ("parallel") grid, pure fast path.
    p4, t4 = _make_inputs(k3, (2, 4, 32, 32), jnp.bfloat16)
    out4 = wmae_loss(p4, t4, weight=0.7, ignore_pixel=-1, block_rows=32)
    jax.block_until_ready(out4)
    ref4 = _wmae_ref(p4, t4, weight=0.7, ignore_pixel=-1)
    assert jnp.allclose(out4, ref4, atol=1e-3, rtol=1e-3), (out4, ref4)

    # 5) bf16, odd block count -> clamped phantom block + partial edge block.
    p5, t5 = _make_inputs(k4, (2, 4, 40, 32), jnp.bfloat16)
    out5 = wmae_loss(p5, t5, weight=0.7, ignore_pixel=-1, block_rows=32)
    jax.block_until_ready(out5)
    ref5 = _wmae_ref(p5, t5, weight=0.7, ignore_pixel=-1)
    assert jnp.allclose(out5, ref5, atol=1e-3, rtol=1e-3), (out5, ref5)

    # 6) All elements ignored -> NaN-mean replaced by 0.0.
    p6 = jax.random.normal(k5, (2, 4, 8, 8), dtype=jnp.float32)
    t6 = jnp.full((2, 4, 8, 8), -1.0, dtype=jnp.float32)
    out6 = wmae_loss(p6, t6, weight=0.7, ignore_pixel=-1)
    jax.block_until_ready(out6)
    assert float(out6) == 0.0, out6

    # 7) Empty input -> 0.0 without tracing a kernel.
    assert float(wmae_loss(jnp.zeros((0, 4)), jnp.zeros((0, 4)))) == 0.0

    print("KERNEL_OK")
</pallas_src>

<mosaic_0001>
module attributes {stable_mosaic.version = 11 : i64} {
  func.func @_wmae_kernel(%arg0: i32, %arg1: i32, %arg2: memref<32x128xf32, #tpu.memory_space<vmem>>, %arg3: memref<32x128xf32, #tpu.memory_space<vmem>>, %arg4: memref<1x8x128xf32, #tpu.memory_space<vmem>>, %arg5: memref<1x8x128xf32, #tpu.memory_space<vmem>>) attributes {dimension_semantics = [#tpu.dimension_semantics<parallel>, #tpu.dimension_semantics<arbitrary>], iteration_bounds = array<i64: 1, 1>, scalar_prefetch = 0 : i64, scratch_operands = 0 : i64, tpu.core_type = #tpu.core_type<tc>, window_params = [{transform_indices = @transform_0, window_bounds = array<i64: 32, 128>}, {transform_indices = @transform_1, window_bounds = array<i64: 32, 128>}, {transform_indices = @transform_2, window_bounds = array<i64: 1, 8, 128>}, {transform_indices = @transform_3, window_bounds = array<i64: 1, 8, 128>}]} {
    %c0_i32 = arith.constant 0 : i32
    %0 = arith.cmpi eq, %arg1, %c0_i32 : i32
    %1 = arith.extui %0 : i1 to i32
    %c0_i32_0 = arith.constant 0 : i32
    %2 = arith.cmpi ne, %1, %c0_i32_0 : i32
    scf.if %2 {
      %cst = arith.constant 0.000000e+00 : f32
      %11 = vector.broadcast %cst : f32 to vector<1x8x128xf32>
      %c0 = arith.constant 0 : index
      %c0_5 = arith.constant 0 : index
      %c0_6 = arith.constant 0 : index
      %12 = vector.load %arg4[%c0, %c0_5, %c0_6] : memref<1x8x128xf32, #tpu.memory_space<vmem>>, vector<1x8x128xf32>
      tpu.vector_store %arg4[%c0, %c0_5, %c0_6], %11 {strides = array<i32>} : memref<1x8x128xf32, #tpu.memory_space<vmem>>, vector<1x8x128xf32>,
      %cst_7 = arith.constant 0.000000e+00 : f32
      %13 = vector.broadcast %cst_7 : f32 to vector<1x8x128xf32>
      %c0_8 = arith.constant 0 : index
      %c0_9 = arith.constant 0 : index
      %c0_10 = arith.constant 0 : index
      %14 = vector.load %arg5[%c0_8, %c0_9, %c0_10] : memref<1x8x128xf32, #tpu.memory_space<vmem>>, vector<1x8x128xf32>
      tpu.vector_store %arg5[%c0_8, %c0_9, %c0_10], %13 {strides = array<i32>} : memref<1x8x128xf32, #tpu.memory_space<vmem>>, vector<1x8x128xf32>,
    } else {
    }
    %c1_i32 = arith.constant 1 : i32
    %3 = arith.muli %arg0, %c1_i32 : i32
    %4 = arith.addi %3, %arg1 : i32
    %c0_i32_1 = arith.constant 0 : i32
    %5 = arith.cmpi sge, %4, %c0_i32_1 : i32
    %6 = arith.extui %5 : i1 to i32
    %c0_i32_2 = arith.constant 0 : i32
    %7 = arith.cmpi ne, %6, %c0_i32_2 : i32
    scf.if %7 {
      %c0 = arith.constant 0 : index
      %c0_5 = arith.constant 0 : index
      %11 = vector.load %arg2[%c0, %c0_5] : memref<32x128xf32, #tpu.memory_space<vmem>>, vector<32x128xf32>
      %c0_6 = arith.constant 0 : index
      %c0_7 = arith.constant 0 : index
      %12 = vector.load %arg3[%c0_6, %c0_7] : memref<32x128xf32, #tpu.memory_space<vmem>>, vector<32x128xf32>
      %cst = arith.constant -1.000000e+00 : f32
      %13 = vector.broadcast %cst : f32 to vector<32x128xf32>
      %14 = arith.cmpf one, %12, %13 : vector<32x128xf32>
      %15 = arith.subf %11, %12 : vector<32x128xf32>
      %16 = math.absf %15 : vector<32x128xf32>
      %c1_i32_8 = arith.constant 1 : i32
      %17 = arith.muli %arg0, %c1_i32_8 : i32
      %18 = arith.addi %17, %arg1 : i32
      %c32_i32 = arith.constant 32 : i32
      %19 = arith.muli %18, %c32_i32 : i32
      %20 = tpu.iota {dimensions = array<i32: 0>} : vector<32x128xi32>
      %21 = vector.broadcast %19 : i32 to vector<32x128xi32>
      %22 = arith.addi %21, %20 : vector<32x128xi32>
      %c16_i32 = arith.constant 16 : i32
      %23 = vector.broadcast %c16_i32 : i32 to vector<32x128xi32>
      %24 = arith.cmpi slt, %22, %23 : vector<32x128xi32>
      %25 = arith.andi %14, %24 : vector<32x128xi1>
      %cst_9 = arith.constant 0.000000e+00 : f32
      %26 = vector.broadcast %cst_9 : f32 to vector<32x128xf32>
      %27 = arith.select %25, %16, %26 : vector<32x128xi1>, vector<32x128xf32>
      %28 = arith.extui %25 : vector<32x128xi1> to vector<32x128xi32>
      %29 = arith.sitofp %28 : vector<32x128xi32> to vector<32x128xf32>
      %c0_10 = arith.constant 0 : index
      %c0_11 = arith.constant 0 : index
      %c0_12 = arith.constant 0 : index
      %30 = vector.load %arg4[%c0_10, %c0_11, %c0_12] : memref<1x8x128xf32, #tpu.memory_space<vmem>>, vector<1x8x128xf32>
      %31 = vector.shape_cast %27 : vector<32x128xf32> to vector<4x8x128xf32>
      %cst_13 = arith.constant dense<0.000000e+00> : vector<8x128xf32>
      %32 = vector.multi_reduction <add>, %31, %cst_13 [0] : vector<4x8x128xf32> to vector<8x128xf32>
      %33 = vector.shape_cast %32 : vector<8x128xf32> to vector<1x8x128xf32>
      %34 = arith.addf %30, %33 : vector<1x8x128xf32>
      %c0_14 = arith.constant 0 : index
      %c0_15 = arith.constant 0 : index
      %c0_16 = arith.constant 0 : index
      %35 = vector.load %arg4[%c0_14, %c0_15, %c0_16] : memref<1x8x128xf32, #tpu.memory_space<vmem>>, vector<1x8x128xf32>
      tpu.vector_store %arg4[%c0_14, %c0_15, %c0_16], %34 {strides = array<i32>} : memref<1x8x128xf32, #tpu.memory_space<vmem>>, vector<1x8x128xf32>,
      %c0_17 = arith.constant 0 : index
      %c0_18 = arith.constant 0 : index
      %c0_19 = arith.constant 0 : index
      %36 = vector.load %arg5[%c0_17, %c0_18, %c0_19] : memref<1x8x128xf32, #tpu.memory_space<vmem>>, vector<1x8x128xf32>
      %37 = vector.shape_cast %29 : vector<32x128xf32> to vector<4x8x128xf32>
      %cst_20 = arith.constant dense<0.000000e+00> : vector<8x128xf32>
      %38 = vector.multi_reduction <add>, %37, %cst_20 [0] : vector<4x8x128xf32> to vector<8x128xf32>
      %39 = vector.shape_cast %38 : vector<8x128xf32> to vector<1x8x128xf32>
      %40 = arith.addf %36, %39 : vector<1x8x128xf32>
      %c0_21 = arith.constant 0 : index
      %c0_22 = arith.constant 0 : index
      %c0_23 = arith.constant 0 : index
      %41 = vector.load %arg5[%c0_21, %c0_22, %c0_23] : memref<1x8x128xf32, #tpu.memory_space<vmem>>, vector<1x8x128xf32>
      tpu.vector_store %arg5[%c0_21, %c0_22, %c0_23], %40 {strides = array<i32>} : memref<1x8x128xf32, #tpu.memory_space<vmem>>, vector<1x8x128xf32>,
    } else {
    }
    %c0_i32_3 = arith.constant 0 : i32
    %8 = arith.cmpi slt, %4, %c0_i32_3 : i32
    %9 = arith.extui %8 : i1 to i32
    %c0_i32_4 = arith.constant 0 : i32
    %10 = arith.cmpi ne, %9, %c0_i32_4 : i32
    scf.if %10 {
      %c0 = arith.constant 0 : index
      %c0_5 = arith.constant 0 : index
      %11 = vector.load %arg2[%c0, %c0_5] : memref<32x128xf32, #tpu.memory_space<vmem>>, vector<32x128xf32>
      %c0_6 = arith.constant 0 : index
      %c0_7 = arith.constant 0 : index
      %12 = vector.load %arg3[%c0_6, %c0_7] : memref<32x128xf32, #tpu.memory_space<vmem>>, vector<32x128xf32>
      %cst = arith.constant -1.000000e+00 : f32
      %13 = vector.broadcast %cst : f32 to vector<32x128xf32>
      %14 = arith.cmpf one, %12, %13 : vector<32x128xf32>
      %15 = arith.subf %11, %12 : vector<32x128xf32>
      %16 = math.absf %15 : vector<32x128xf32>
      %cst_8 = arith.constant 0.000000e+00 : f32
      %17 = vector.broadcast %cst_8 : f32 to vector<32x128xf32>
      %18 = arith.select %14, %16, %17 : vector<32x128xi1>, vector<32x128xf32>
      %19 = arith.extui %14 : vector<32x128xi1> to vector<32x128xi32>
      %20 = arith.sitofp %19 : vector<32x128xi32> to vector<32x128xf32>
      %c0_9 = arith.constant 0 : index
      %c0_10 = arith.constant 0 : index
      %c0_11 = arith.constant 0 : index
      %21 = vector.load %arg4[%c0_9, %c0_10, %c0_11] : memref<1x8x128xf32, #tpu.memory_space<vmem>>, vector<1x8x128xf32>
      %22 = vector.shape_cast %18 : vector<32x128xf32> to vector<4x8x128xf32>
      %cst_12 = arith.constant dense<0.000000e+00> : vector<8x128xf32>
      %23 = vector.multi_reduction <add>, %22, %cst_12 [0] : vector<4x8x128xf32> to vector<8x128xf32>
      %24 = vector.shape_cast %23 : vector<8x128xf32> to vector<1x8x128xf32>
      %25 = arith.addf %21, %24 : vector<1x8x128xf32>
      %c0_13 = arith.constant 0 : index
      %c0_14 = arith.constant 0 : index
      %c0_15 = arith.constant 0 : index
      %26 = vector.load %arg4[%c0_13, %c0_14, %c0_15] : memref<1x8x128xf32, #tpu.memory_space<vmem>>, vector<1x8x128xf32>
      tpu.vector_store %arg4[%c0_13, %c0_14, %c0_15], %25 {strides = array<i32>} : memref<1x8x128xf32, #tpu.memory_space<vmem>>, vector<1x8x128xf32>,
      %c0_16 = arith.constant 0 : index
      %c0_17 = arith.constant 0 : index
      %c0_18 = arith.constant 0 : index
      %27 = vector.load %arg5[%c0_16, %c0_17, %c0_18] : memref<1x8x128xf32, #tpu.memory_space<vmem>>, vector<1x8x128xf32>
      %28 = vector.shape_cast %20 : vector<32x128xf32> to vector<4x8x128xf32>
      %cst_19 = arith.constant dense<0.000000e+00> : vector<8x128xf32>
      %29 = vector.multi_reduction <add>, %28, %cst_19 [0] : vector<4x8x128xf32> to vector<8x128xf32>
      %30 = vector.shape_cast %29 : vector<8x128xf32> to vector<1x8x128xf32>
      %31 = arith.addf %27, %30 : vector<1x8x128xf32>
      %c0_20 = arith.constant 0 : index
      %c0_21 = arith.constant 0 : index
      %c0_22 = arith.constant 0 : index
      %32 = vector.load %arg5[%c0_20, %c0_21, %c0_22] : memref<1x8x128xf32, #tpu.memory_space<vmem>>, vector<1x8x128xf32>
      tpu.vector_store %arg5[%c0_20, %c0_21, %c0_22], %31 {strides = array<i32>} : memref<1x8x128xf32, #tpu.memory_space<vmem>>, vector<1x8x128xf32>,
    } else {
    }
    return
  }
  func.func @transform_0(%arg0: i32, %arg1: i32) -> (i32, i32) {
    %c1_i32 = arith.constant 1 : i32
    %0 = arith.muli %arg0, %c1_i32 : i32
    %1 = arith.addi %0, %arg1 : i32
    %c0_i32 = arith.constant 0 : i32
    %c0_i32_0 = arith.constant 0 : i32
    return %1, %c0_i32 : i32, i32
  }
  func.func @transform_1(%arg0: i32, %arg1: i32) -> (i32, i32) {
    %c1_i32 = arith.constant 1 : i32
    %0 = arith.muli %arg0, %c1_i32 : i32
    %1 = arith.addi %0, %arg1 : i32
    %c0_i32 = arith.constant 0 : i32
    %c0_i32_0 = arith.constant 0 : i32
    return %1, %c0_i32 : i32, i32
  }
  func.func @transform_2(%arg0: i32, %arg1: i32) -> (i32, i32, i32) {
    %c0_i32 = arith.constant 0 : i32
    %c0_i32_0 = arith.constant 0 : i32
    %c0_i32_1 = arith.constant 0 : i32
    return %arg0, %c0_i32, %c0_i32_0 : i32, i32, i32
  }
  func.func @transform_3(%arg0: i32, %arg1: i32) -> (i32, i32, i32) {
    %c0_i32 = arith.constant 0 : i32
    %c0_i32_0 = arith.constant 0 : i32
    %c0_i32_1 = arith.constant 0 : i32
    return %arg0, %c0_i32, %c0_i32_0 : i32, i32, i32
  }
}

</mosaic_0001>

<llo_original>
// kernel: tpu_custom_call.1
$region0: #{tpu_custom_call.1}
  #allocation0 [shape = 'u32[]', space=smem, size = 0x4, offset = 0x4, fixed_abs, tag = 'smem constant byte address 0x4 - core index']
  #allocation1 [shape = 'u32[72,128]{1,0:T(1,128)}', space=vmem, size = 0x9000, scoped, tag = 'internal scratch']
  %s0 = inlined_call_operand.hbm [shape: f32[16,128], index: 0, kind: input, shape index: {}]
  %s1 = inlined_call_operand.hbm [shape: f32[16,128], index: 1, kind: input, shape index: {}]
  %s2 = inlined_call_operand.hbm [shape: f32[1,8,128], index: 2, kind: output, shape index: {0}]
  %s3 = inlined_call_operand.hbm [shape: f32[1,8,128], index: 3, kind: output, shape index: {1}]
  %4 = xla_tuple %s2, %s3
  %s5 = sld [smem:[#allocation0]]
  $region46: #{tpu_custom_call.1} parent=0
    _
  %s7 = ssub.s32 1, %s5
  %s8 = scalar_select 0, %s7, %s5
  $region1: #{tpu_custom_call.1} parent=0
    #allocation2 [shape = 'u8[16384]{0}', space=vmem, size = 0x4000, scoped, tag = 'input window, operand 0, single buffered']
    #allocation3 [shape = 's32[1]{0}', space=sflag, size = 0x4, scoped, tag = 'scoped memory for tpu_custom_call.1']
    #allocation4 [shape = 's32[1]{0}', space=sflag, size = 0x4, scoped, tag = 'scoped memory for tpu_custom_call.1']
    #allocation5 [shape = 'u8[16384]{0}', space=vmem, size = 0x4000, scoped, tag = 'input window, operand 1, single buffered']
    #allocation6 [shape = 's32[1]{0}', space=sflag, size = 0x4, scoped, tag = 'scoped memory for tpu_custom_call.1']
    #allocation7 [shape = 'u8[4096]{0}', space=vmem, size = 0x1000, scoped, tag = 'output window, operand 0, single buffered']
    #allocation8 [shape = 'u8[4096]{0}', space=vmem, size = 0x1000, scoped, tag = 'output window, operand 1, single buffered']
    #allocation9 [shape = 's32[1]{0}', space=sflag, size = 0x4, scoped, tag = 'scoped memory for tpu_custom_call.1']
    %9 = vsyncpa [#allocation3], 0
    %10 = vsyncpa [#allocation6], 0
    %11 = vsyncpa [#allocation4], 0
    %12 = vsyncpa [#allocation9], 0
    // Predicated region
    $region2: #{tpu_custom_call.1} parent=1 // pred_check
      _
    $region3: #{tpu_custom_call.1} parent=1 // pred_check_branch
      %14 = sbr.rel (0) target = $region5
    $region4: #{tpu_custom_call.1} parent=1 // pred_region
      %s15 = sadd.s32 0, 0
      %s16 = smul.u32 4, %s15
      %s17 = ssub.s32 2, %s16
      %s18 = smul.u32 8, %s17
      %s19 = ssub.s32 32, %s18
      %s20 = sshll.u32 %s19, 4
      %21 = vsyncadd [#allocation3], %s20
      %p22 = scmp.ne.s32.totalorder 0, %s18
      %s23 = smul.addr %s16, 8
      %s24 = scalar_lea.hbm %s0, %s23
      %s25 = smul.u32 8, %s17
      %s26 = sshll.u32 %s24, 4
      %s27 = int_to_ptr.hbm [resolvable:$true] %s26
      %s28 = sshll.u32 [#allocation2], 4
      %s29 = int_to_ptr.vmem [resolvable:$true] %s28
      %s30 = sshll.u32 %s25, 4
      %34 = dma.hbm_to_vmem [thread:$0]  (%p22), %s27, %s30, %s29, [#allocation3], 128, 128, 8
    $region5: #{tpu_custom_call.1} parent=1 // pred_fallthru
      _
    // Predicated region
    $region6: #{tpu_custom_call.1} parent=1 // pred_check
      _
    $region7: #{tpu_custom_call.1} parent=1 // pred_check_branch
      %36 = sbr.rel (0) target = $region9
    $region8: #{tpu_custom_call.1} parent=1 // pred_region
      %s37 = sadd.s32 0, 0
      %s38 = smul.u32 4, %s37
      %s39 = ssub.s32 2, %s38
      %s40 = smul.u32 8, %s39
      %s41 = ssub.s32 32, %s40
      %s42 = sshll.u32 %s41, 4
      %43 = vsyncadd [#allocation6], %s42
      %p44 = scmp.ne.s32.totalorder 0, %s40
      %s45 = smul.addr %s38, 8
      %s46 = scalar_lea.hbm %s1, %s45
      %s47 = smul.u32 8, %s39
      %s48 = sshll.u32 %s46, 4
      %s49 = int_to_ptr.hbm [resolvable:$true] %s48
      %s50 = sshll.u32 [#allocation5], 4
      %s51 = int_to_ptr.vmem [resolvable:$true] %s50
      %s52 = sshll.u32 %s47, 4
      %56 = dma.hbm_to_vmem [thread:$0]  (%p44), %s49, %s52, %s51, [#allocation6], 128, 128, 8
    $region9: #{tpu_custom_call.1} parent=1 // pred_fallthru
      _
    // Predicated region
    $region10: #{tpu_custom_call.1} parent=1 // pred_check
      _
    $region11: #{tpu_custom_call.1} parent=1 // pred_check_branch
      %58 = sbr.rel (0) target = $region13
    $region12: #{tpu_custom_call.1} parent=1 // pred_region
      %60 = dma.done [#allocation3], 512
    $region13: #{tpu_custom_call.1} parent=1 // pred_fallthru
      _
    // Predicated region
    $region14: #{tpu_custom_call.1} parent=1 // pred_check
      _
    $region15: #{tpu_custom_call.1} parent=1 // pred_check_branch
      %62 = sbr.rel (0) target = $region17
    $region16: #{tpu_custom_call.1} parent=1 // pred_region
      %64 = dma.done [#allocation6], 512
    $region17: #{tpu_custom_call.1} parent=1 // pred_fallthru
      _
    %s65 = sadd.s32 0, 0
    %s66 = smul.u32 4, %s65
    %s67 = ssub.s32 2, %s66
    %s68 = smul.u32 8, %s67
    %s69 = sadd.s32 0, 0
    %s70 = smul.u32 4, %s69
    %s71 = ssub.s32 2, %s70
    %s72 = smul.u32 8, %s71
    %p73 = scmp.eq.s32.totalorder 0, 0
    // Predicated region
    $region18: #{tpu_custom_call.1} parent=1 // pred_check
      %p74 = pneg %p73
    $region19: #{tpu_custom_call.1} parent=1 // pred_check_branch
      %76 = sbr.rel (%p74) target = $region21
    $region20: #{tpu_custom_call.1} parent=1 // pred_region
      %77 = vst [vmem:[#allocation7] sm:$0xff] 0.0
      %78 = vst [vmem:[#allocation8] sm:$0xff] 0.0
    $region21: #{tpu_custom_call.1} parent=1 // pred_fallthru
      _
    %s79 = sadd.s32 0, 0
    %p80 = scmp.ge.s32.totalorder %s79, 0
    // Predicated region
    $region22: #{tpu_custom_call.1} parent=1 // pred_check
      %p81 = pneg %p80
    $region23: #{tpu_custom_call.1} parent=1 // pred_check_branch
      %83 = sbr.rel (%p81) target = $region25
    $region24: #{tpu_custom_call.1} parent=1 // pred_region
      %v84 = vld [vmem:[#allocation2] sm:$0xff]
      %v85 = vld [vmem:[#allocation2 + $0x8] sm:$0xff]
      %v86 = vld [vmem:[#allocation2 + $0x10] sm:$0xff]
      %v87 = vld [vmem:[#allocation2 + $0x18] sm:$0xff]
      %v88 = vld [vmem:[#allocation5] sm:$0xff]
      %v89 = vld [vmem:[#allocation5 + $0x8] sm:$0xff]
      %v90 = vld [vmem:[#allocation5 + $0x10] sm:$0xff]
      %v91 = vld [vmem:[#allocation5 + $0x18] sm:$0xff]
      %vm92 = vcmp.ne.f32.partialorder %v88, -1.0
      %vm93 = vcmp.ne.f32.partialorder %v89, -1.0
      %vm94 = vcmp.ne.f32.partialorder %v90, -1.0
      %vm95 = vcmp.ne.f32.partialorder %v91, -1.0
      %v96 = vsub.f32 %v84, %v88
      %v97 = vsub.f32 %v85, %v89
      %v98 = vsub.f32 %v86, %v90
      %v99 = vsub.f32 %v87, %v91
      %v100 = vand.u32 2147483647, %v96
      %v101 = vand.u32 2147483647, %v97
      %v102 = vand.u32 2147483647, %v98
      %v103 = vand.u32 2147483647, %v99
      %s104 = smul.u32 %s79, 32
      %v105 = vlaneseq
      %v106 = vshrl.u32 %v105, 7
      %v107 = vadd.s32 %v106, 8
      %v108 = vadd.s32 %v106, 16
      %v109 = vadd.s32 %v106, 24
      %v110 = vstv %s104
      %v111 = vadd.s32 %v110, %v106
      %v112 = vadd.s32 %v110, %v107
      %v113 = vadd.s32 %v110, %v108
      %v114 = vadd.s32 %v110, %v109
      %vm115 = vcmp.lt.s32.totalorder %v111, 16
      %vm116 = vcmp.lt.s32.totalorder %v112, 16
      %vm117 = vcmp.lt.s32.totalorder %v113, 16
      %vm118 = vcmp.lt.s32.totalorder %v114, 16
      %vm119 = vmand %vm92, %vm115
      %vm120 = vmand %vm93, %vm116
      %vm121 = vmand %vm94, %vm117
      %vm122 = vmand %vm95, %vm118
      %v123 = vsel %vm119, %v100, 0.0
      %v124 = vsel %vm120, %v101, 0.0
      %v125 = vsel %vm121, %v102, 0.0
      %v126 = vsel %vm122, %v103, 0.0
      %v127 = vsel %vm119, 1, 0
      %v128 = vsel %vm120, 1, 0
      %v129 = vsel %vm121, 1, 0
      %v130 = vsel %vm122, 1, 0
      %v131 = vcvt.s32.f32 %v127
      %v132 = vcvt.s32.f32 %v128
      %v133 = vcvt.s32.f32 %v129
      %v134 = vcvt.s32.f32 %v130
      %v135 = vld [vmem:[#allocation7] sm:$0xff]
      %v136 = vadd.f32 %v123, %v124
      %v137 = vadd.f32 %v136, %v125
      %v138 = vadd.f32 %v137, %v126
      %v139 = vadd.f32 %v135, %v138
      %140 = vst [vmem:[#allocation7] sm:$0xff] %v139
      %v141 = vld [vmem:[#allocation8] sm:$0xff]
      %v142 = vadd.f32 %v131, %v132
      %v143 = vadd.f32 %v142, %v133
      %v144 = vadd.f32 %v143, %v134
      %v145 = vadd.f32 %v141, %v144
      %146 = vst [vmem:[#allocation8] sm:$0xff] %v145
    $region25: #{tpu_custom_call.1} parent=1 // pred_fallthru
      _
    %p147 = scmp.lt.s32.totalorder %s79, 0
    // Predicated region
    $region26: #{tpu_custom_call.1} parent=1 // pred_check
      %p148 = pneg %p147
    $region27: #{tpu_custom_call.1} parent=1 // pred_check_branch
      %150 = sbr.rel (%p148) target = $region29
    $region28: #{tpu_custom_call.1} parent=1 // pred_region
      %v151 = vld [vmem:[#allocation2] sm:$0xff]
      %v152 = vld [vmem:[#allocation2 + $0x8] sm:$0xff]
      %v153 = vld [vmem:[#allocation2 + $0x10] sm:$0xff]
      %v154 = vld [vmem:[#allocation2 + $0x18] sm:$0xff]
      %v155 = vld [vmem:[#allocation5] sm:$0xff]
      %v156 = vld [vmem:[#allocation5 + $0x8] sm:$0xff]
      %v157 = vld [vmem:[#allocation5 + $0x10] sm:$0xff]
      %v158 = vld [vmem:[#allocation5 + $0x18] sm:$0xff]
      %vm159 = vcmp.ne.f32.partialorder %v155, -1.0
      %vm160 = vcmp.ne.f32.partialorder %v156, -1.0
      %vm161 = vcmp.ne.f32.partialorder %v157, -1.0
      %vm162 = vcmp.ne.f32.partialorder %v158, -1.0
      %v163 = vsub.f32 %v151, %v155
      %v164 = vsub.f32 %v152, %v156
      %v165 = vsub.f32 %v153, %v157
      %v166 = vsub.f32 %v154, %v158
      %v167 = vand.u32 2147483647, %v163
      %v168 = vand.u32 2147483647, %v164
      %v169 = vand.u32 2147483647, %v165
      %v170 = vand.u32 2147483647, %v166
      %v171 = vsel %vm159, %v167, 0.0
      %v172 = vsel %vm160, %v168, 0.0
      %v173 = vsel %vm161, %v169, 0.0
      %v174 = vsel %vm162, %v170, 0.0
      %v175 = vsel %vm159, 1, 0
      %v176 = vsel %vm160, 1, 0
      %v177 = vsel %vm161, 1, 0
      %v178 = vsel %vm162, 1, 0
      %v179 = vcvt.s32.f32 %v175
      %v180 = vcvt.s32.f32 %v176
      %v181 = vcvt.s32.f32 %v177
      %v182 = vcvt.s32.f32 %v178
      %v183 = vld [vmem:[#allocation7] sm:$0xff]
      %v184 = vadd.f32 %v171, %v172
      %v185 = vadd.f32 %v184, %v173
      %v186 = vadd.f32 %v185, %v174
      %v187 = vadd.f32 %v183, %v186
      %188 = vst [vmem:[#allocation7] sm:$0xff] %v187
      %v189 = vld [vmem:[#allocation8] sm:$0xff]
      %v190 = vadd.f32 %v179, %v180
      %v191 = vadd.f32 %v190, %v181
      %v192 = vadd.f32 %v191, %v182
      %v193 = vadd.f32 %v189, %v192
      %194 = vst [vmem:[#allocation8] sm:$0xff] %v193
    $region29: #{tpu_custom_call.1} parent=1 // pred_fallthru
      _
    // Predicated region
    $region30: #{tpu_custom_call.1} parent=1 // pred_check
      _
    $region31: #{tpu_custom_call.1} parent=1 // pred_check_branch
      %196 = sbr.rel (0) target = $region33
    $region32: #{tpu_custom_call.1} parent=1 // pred_region
      %198 = vsyncadd [#allocation4], 0
      %s200 = sshll.u32 [#allocation7], 4
      %s201 = int_to_ptr.vmem [resolvable:$true] %s200
      %s202 = sshll.u32 %s2, 4
      %s203 = int_to_ptr.hbm [resolvable:$true] %s202
      %205 = dma.vmem_to_hbm [thread:$0]  %s201, 128, %s203, [#allocation4]
    $region33: #{tpu_custom_call.1} parent=1 // pred_fallthru
      _
    // Predicated region
    $region34: #{tpu_custom_call.1} parent=1 // pred_check
      _
    $region35: #{tpu_custom_call.1} parent=1 // pred_check_branch
      %207 = sbr.rel (0) target = $region37
    $region36: #{tpu_custom_call.1} parent=1 // pred_region
      %209 = vsyncadd [#allocation9], 0
      %s211 = sshll.u32 [#allocation8], 4
      %s212 = int_to_ptr.vmem [resolvable:$true] %s211
      %s213 = sshll.u32 %s3, 4
      %s214 = int_to_ptr.hbm [resolvable:$true] %s213
      %216 = dma.vmem_to_hbm [thread:$0]  %s212, 128, %s214, [#allocation9]
    $region37: #{tpu_custom_call.1} parent=1 // pred_fallthru
      _
    // Predicated region
    $region38: #{tpu_custom_call.1} parent=1 // pred_check
      _
    $region39: #{tpu_custom_call.1} parent=1 // pred_check_branch
      %218 = sbr.rel (0) target = $region41
    $region40: #{tpu_custom_call.1} parent=1 // pred_region
      %220 = dma.done [#allocation4], 128
    $region41: #{tpu_custom_call.1} parent=1 // pred_fallthru
      _
    // Predicated region
    $region42: #{tpu_custom_call.1} parent=1 // pred_check
      _
    $region43: #{tpu_custom_call.1} parent=1 // pred_check_branch
      %222 = sbr.rel (0) target = $region45
    $region44: #{tpu_custom_call.1} parent=1 // pred_region
      %224 = dma.done [#allocation9], 128
    $region45: #{tpu_custom_call.1} parent=1 // pred_fallthru
      _
    %225 = vsyncpa [#allocation3], 1
    %226 = vsyncpa [#allocation6], 1
    %227 = vsyncpa [#allocation4], 1
    %228 = vsyncpa [#allocation9], 1

</llo_original>
